<compile_context>
chip_gen: v5e
topology: v5e:2x2
jax: 0.10.0
libtpu: 0.0.40
codegen_flags: <defaults>
</compile_context>

<pallas_src>
import functools
import math

import jax
import jax.numpy as jnp
from jax.experimental import pallas as pl
from jax.experimental.pallas import tpu as pltpu


# ------------------------------ activations ---------------------------------

def _gelu_tanh(x):
    # TODO(synk): HF ACT2FN["gelu"] is the exact erf form; Mosaic has no erf
    # lowering, so we use the tanh approximation ("gelu_pytorch_tanh"), |err| ~1e-3.
    c = math.sqrt(2.0 / math.pi)
    return 0.5 * x * (1.0 + jnp.tanh(c * (x + 0.044715 * x * x * x)))


def _apply_act(x, activation):
    if activation in ("gelu", "gelu_new", "gelu_pytorch_tanh"):
        return _gelu_tanh(x)
    if activation == "relu":
        return jnp.maximum(x, 0.0)
    raise ValueError(f"unsupported activation: {activation}")


# ------------------------------ helpers --------------------------------------

def _round_up(x, m):
    return ((x + m - 1) // m) * m


def _pick_block_k(inter, block_k):
    """Largest multiple of 128 that divides `inter` and is <= block_k.

    tk must divide I exactly: a padded (garbage) K-block would feed the
    reduction and corrupt valid outputs.
    """
    if inter <= block_k or inter % 128 != 0:
        return inter
    t = (min(block_k, inter) // 128) * 128
    while t >= 128:
        if inter % t == 0:
            return t
        t -= 128
    return inter


# ------------------------------ fused kernel --------------------------------

def _ffn_kernel(x_ref, w1_ref, b1_ref, w2_ref, b2_ref, o_ref, acc_ref, *,
                activation):
    """grid = (M tiles, I tiles).  One step: partial dense1 -> act -> partial dense2."""
    k = pl.program_id(1)

    @pl.when(k == 0)
    def _init():
        # Initialise the accumulator with broadcast b2: no epilogue bias add.
        acc_ref[...] = jnp.broadcast_to(b2_ref[...], acc_ref.shape)

    # Complete pre-activation of this K-block's intermediate columns
    # (H contraction is not tiled), so the nonlinearity is exact per block.
    h = jnp.dot(x_ref[...], w1_ref[...],
                preferred_element_type=jnp.float32)           # (tm, tk)  MXU, f32 acc
    h = _apply_act(h + b1_ref[...], activation)               # VPU/EUP in f32
    acc_ref[...] += jnp.dot(h.astype(w2_ref.dtype), w2_ref[...],
                            preferred_element_type=jnp.float32)  # (tm, H)  MXU

    @pl.when(k == pl.num_programs(1) - 1)
    def _store():
        o_ref[...] = acc_ref[...].astype(o_ref.dtype)


def mm_feed_forward(hidden_states, w1, b1, w2, b2, *, activation="gelu",
                    block_m=512, block_k=2048, compute_dtype=jnp.bfloat16):
    """hidden_states: (..., H).  w1: (H, I), b1: (I,), w2: (I, H), b2: (H,).

    Equivalent to the PyTorch MMFeedForward in eval mode (dropout = identity).
    Matmuls run in `compute_dtype` (bf16) on the MXU with f32 accumulation;
    the result is returned in the input dtype.
    """
    orig_shape = hidden_states.shape
    out_dtype = hidden_states.dtype
    H = orig_shape[-1]
    I = w1.shape[1]

    x2 = hidden_states.reshape(-1, H).astype(compute_dtype)
    M = x2.shape[0]

    # ---- row tile: bf16 packs 16 rows/sublane; default block_m=512 is a
    # multiple of the 256-row MXU.  For small M, shrink so the "parallel" axis
    # still has >=2 steps (v7x megacore sharding).
    sub = 16 if jnp.dtype(compute_dtype).itemsize < 4 else 8
    tm = min(block_m, _round_up(M, sub))
    if M > sub and pl.cdiv(M, tm) < 2:
        tm = _round_up(pl.cdiv(M, 2), sub)
    m_tiles = pl.cdiv(M, tm)

    # ---- intermediate (K) tile: must divide I exactly, multiple of 128 lanes.
    tk = _pick_block_k(I, block_k)
    k_tiles = I // tk

    w1c = w1.astype(compute_dtype)
    w2c = w2.astype(compute_dtype)
    b1f = b1.reshape(1, I).astype(jnp.float32)
    b2f = b2.reshape(1, H).astype(jnp.float32)

    # ---- explicit VMEM budget: streamed tiles double-buffered + accumulator,
    # plus headroom for the in-flight (tm, tk) activation and compiler scratch.
    cbytes = jnp.dtype(compute_dtype).itemsize
    obytes = jnp.dtype(out_dtype).itemsize
    vmem_est = (2 * tm * H * cbytes                 # x tile (resident across K, dbl-buffered over M)
                + 2 * tm * H * obytes               # out tile
                + 2 * (H * tk + tk * H) * cbytes    # W1 / W2 K-blocks
                + 2 * (tk + H) * 4                  # b1 / b2 blocks
                + tm * H * 4                        # f32 accumulator scratch
                + tm * tk * 4)                      # in-flight activation
    vmem_limit = min(int(vmem_est * 2) + (4 << 20), 128 * 1024 * 1024)

    out = pl.pallas_call(
        functools.partial(_ffn_kernel, activation=activation),
        out_shape=jax.ShapeDtypeStruct((M, H), out_dtype),
        grid=(m_tiles, k_tiles),
        in_specs=[
            pl.BlockSpec((tm, H), lambda i, k: (i, 0)),   # x: streamed over M, K-resident
            pl.BlockSpec((H, tk), lambda i, k: (0, k)),   # W1 K-block (bf16)
            pl.BlockSpec((1, tk), lambda i, k: (0, k)),   # b1 K-block (f32)
            pl.BlockSpec((tk, H), lambda i, k: (k, 0)),   # W2 K-block (bf16)
            pl.BlockSpec((1, H), lambda i, k: (0, 0)),    # b2 (resident, f32)
        ],
        out_specs=pl.BlockSpec((tm, H), lambda i, k: (i, 0)),
        scratch_shapes=[pltpu.VMEM((tm, H), jnp.float32)],
        compiler_params=pltpu.CompilerParams(
            dimension_semantics=("parallel", "arbitrary"),
            vmem_limit_bytes=vmem_limit),
    )(x2, w1c, b1f, w2c, b2f)

    return out.reshape(orig_shape)


# --------------------------- pure-JAX reference ------------------------------

def mm_feed_forward_reference(x, w1, b1, w2, b2, *, activation="gelu"):
    h = jnp.dot(x, w1, precision=jax.lax.Precision.HIGHEST) + b1
    h = _apply_act(h, activation)
    return jnp.dot(h, w2, precision=jax.lax.Precision.HIGHEST) + b2


# ----------------------------------- main ------------------------------------

if __name__ == "__main__":
    # Small shapes consistent with the module: batch=2, seq=16,
    # hidden_size=128 (lane-dense), intermediate_size=512.
    B, T, HIDDEN, INTER = 2, 16, 128, 512

    root = jax.random.PRNGKey(0)
    k_x, k_w1, k_b1, k_w2, k_b2 = jax.random.split(root, 5)

    x = jax.random.normal(k_x, (B, T, HIDDEN), jnp.float32)

    # torch nn.Linear default init: U(-1/sqrt(fan_in), 1/sqrt(fan_in)) for W and b.
    lim1 = 1.0 / math.sqrt(HIDDEN)
    lim2 = 1.0 / math.sqrt(INTER)
    w1 = jax.random.uniform(k_w1, (HIDDEN, INTER), jnp.float32, -lim1, lim1)
    b1 = jax.random.uniform(k_b1, (INTER,), jnp.float32, -lim1, lim1)
    w2 = jax.random.uniform(k_w2, (INTER, HIDDEN), jnp.float32, -lim2, lim2)
    b2 = jax.random.uniform(k_b2, (HIDDEN,), jnp.float32, -lim2, lim2)

    # block_k=256 so the demo exercises the K-tiled accumulator path (2 K steps);
    # the M axis splits into 2 parallel tiles of 16 rows.
    fwd = jax.jit(functools.partial(mm_feed_forward, activation="gelu",
                                    block_k=256))
    out = jax.block_until_ready(fwd(x, w1, b1, w2, b2))

    assert out.shape == (B, T, HIDDEN), out.shape
    assert out.dtype == x.dtype, out.dtype
    assert bool(jnp.all(jnp.isfinite(out)))

    # f32 reference; bf16 MXU compute with f32 accumulation -> loose tolerance.
    ref = mm_feed_forward_reference(x, w1, b1, w2, b2, activation="gelu")
    max_err = float(jnp.max(jnp.abs(out - ref)))
    assert bool(jnp.allclose(out, ref, rtol=3e-2, atol=3e-2)), max_err

    print("KERNEL_OK")
</pallas_src>

<mosaic_0001>
module attributes {stable_mosaic.version = 11 : i64} {
  func.func @_ffn_kernel(%arg0: i32, %arg1: i32, %arg2: memref<16x128xbf16, #tpu.memory_space<vmem>>, %arg3: memref<128x256xbf16, #tpu.memory_space<vmem>>, %arg4: memref<1x256xf32, #tpu.memory_space<vmem>>, %arg5: memref<256x128xbf16, #tpu.memory_space<vmem>>, %arg6: memref<1x128xf32, #tpu.memory_space<vmem>>, %arg7: memref<16x128xf32, #tpu.memory_space<vmem>>, %arg8: memref<16x128xf32, #tpu.memory_space<vmem>>) attributes {dimension_semantics = [#tpu.dimension_semantics<parallel>, #tpu.dimension_semantics<arbitrary>], iteration_bounds = array<i64: 2, 2>, scalar_prefetch = 0 : i64, scratch_operands = 1 : i64, tpu.core_type = #tpu.core_type<tc>, window_params = [{transform_indices = @transform_0, window_bounds = array<i64: 16, 128>}, {transform_indices = @transform_1, window_bounds = array<i64: 128, 256>}, {transform_indices = @transform_2, window_bounds = array<i64: 1, 256>}, {transform_indices = @transform_3, window_bounds = array<i64: 256, 128>}, {pipeline_mode = #tpu.pipeline_mode<synchronous>, transform_indices = @transform_4, window_bounds = array<i64: 1, 128>}, {transform_indices = @transform_5, window_bounds = array<i64: 16, 128>}]} {
    %c0_i32 = arith.constant 0 : i32
    %0 = arith.cmpi eq, %arg1, %c0_i32 : i32
    %1 = arith.extui %0 : i1 to i32
    %c0_i32_0 = arith.constant 0 : i32
    %2 = arith.cmpi ne, %1, %c0_i32_0 : i32
    scf.if %2 {
      %c0_18 = arith.constant 0 : index
      %c0_19 = arith.constant 0 : index
      %31 = vector.load %arg6[%c0_18, %c0_19] : memref<1x128xf32, #tpu.memory_space<vmem>>, vector<1x128xf32>
      %32 = vector.shape_cast %31 : vector<1x128xf32> to vector<1x128xf32>
      %33 = vector.broadcast %32 : vector<1x128xf32> to vector<16x128xf32>
      %c0_20 = arith.constant 0 : index
      %c0_21 = arith.constant 0 : index
      %34 = vector.load %arg8[%c0_20, %c0_21] : memref<16x128xf32, #tpu.memory_space<vmem>>, vector<16x128xf32>
      tpu.vector_store %arg8[%c0_20, %c0_21], %33 {strides = array<i32>} : memref<16x128xf32, #tpu.memory_space<vmem>>, vector<16x128xf32>,
    } else {
    }
    %c0 = arith.constant 0 : index
    %c0_1 = arith.constant 0 : index
    %3 = vector.load %arg2[%c0, %c0_1] : memref<16x128xbf16, #tpu.memory_space<vmem>>, vector<16x128xbf16>
    %c0_2 = arith.constant 0 : index
    %c0_3 = arith.constant 0 : index
    %4 = vector.load %arg3[%c0_2, %c0_3] : memref<128x256xbf16, #tpu.memory_space<vmem>>, vector<128x256xbf16>
    %cst = arith.constant dense<0.000000e+00> : vector<16x256xf32>
    %5 = tpu.matmul %3, %4, %cst {dimension_numbers = #tpu.dot_dimension_numbers<[1], [0], [0], [1], [0, 0, 1, 1], [], []>} : vector<16x128xbf16>, vector<128x256xbf16>, vector<16x256xf32> -> vector<16x256xf32>
    %c0_4 = arith.constant 0 : index
    %c0_5 = arith.constant 0 : index
    %6 = vector.load %arg4[%c0_4, %c0_5] : memref<1x256xf32, #tpu.memory_space<vmem>>, vector<1x256xf32>
    %7 = vector.broadcast %6 : vector<1x256xf32> to vector<16x256xf32>
    %8 = arith.addf %5, %7 : vector<16x256xf32>
    %cst_6 = arith.constant 5.000000e-01 : f32
    %9 = vector.broadcast %cst_6 : f32 to vector<16x256xf32>
    %10 = arith.mulf %9, %8 : vector<16x256xf32>
    %cst_7 = arith.constant 4.471500e-02 : f32
    %11 = vector.broadcast %cst_7 : f32 to vector<16x256xf32>
    %12 = arith.mulf %11, %8 : vector<16x256xf32>
    %13 = arith.mulf %12, %8 : vector<16x256xf32>
    %14 = arith.mulf %13, %8 : vector<16x256xf32>
    %15 = arith.addf %8, %14 : vector<16x256xf32>
    %cst_8 = arith.constant 0.797884583 : f32
    %16 = vector.broadcast %cst_8 : f32 to vector<16x256xf32>
    %17 = arith.mulf %16, %15 : vector<16x256xf32>
    %18 = math.tanh %17 : vector<16x256xf32>
    %cst_9 = arith.constant 1.000000e+00 : f32
    %19 = vector.broadcast %cst_9 : f32 to vector<16x256xf32>
    %20 = arith.addf %19, %18 : vector<16x256xf32>
    %21 = arith.mulf %10, %20 : vector<16x256xf32>
    %c0_10 = arith.constant 0 : index
    %c0_11 = arith.constant 0 : index
    %22 = vector.load %arg8[%c0_10, %c0_11] : memref<16x128xf32, #tpu.memory_space<vmem>>, vector<16x128xf32>
    %23 = arith.truncf %21 : vector<16x256xf32> to vector<16x256xbf16>
    %c0_12 = arith.constant 0 : index
    %c0_13 = arith.constant 0 : index
    %24 = vector.load %arg5[%c0_12, %c0_13] : memref<256x128xbf16, #tpu.memory_space<vmem>>, vector<256x128xbf16>
    %cst_14 = arith.constant dense<0.000000e+00> : vector<16x128xf32>
    %25 = tpu.matmul %23, %24, %cst_14 {dimension_numbers = #tpu.dot_dimension_numbers<[1], [0], [0], [1], [0, 0, 1, 1], [], []>} : vector<16x256xbf16>, vector<256x128xbf16>, vector<16x128xf32> -> vector<16x128xf32>
    %26 = arith.addf %22, %25 : vector<16x128xf32>
    %c0_15 = arith.constant 0 : index
    %c0_16 = arith.constant 0 : index
    %27 = vector.load %arg8[%c0_15, %c0_16] : memref<16x128xf32, #tpu.memory_space<vmem>>, vector<16x128xf32>
    tpu.vector_store %arg8[%c0_15, %c0_16], %26 {strides = array<i32>} : memref<16x128xf32, #tpu.memory_space<vmem>>, vector<16x128xf32>,
    %c1_i32 = arith.constant 1 : i32
    %28 = arith.cmpi eq, %arg1, %c1_i32 : i32
    %29 = arith.extui %28 : i1 to i32
    %c0_i32_17 = arith.constant 0 : i32
    %30 = arith.cmpi ne, %29, %c0_i32_17 : i32
    scf.if %30 {
      %c0_18 = arith.constant 0 : index
      %c0_19 = arith.constant 0 : index
      %31 = vector.load %arg8[%c0_18, %c0_19] : memref<16x128xf32, #tpu.memory_space<vmem>>, vector<16x128xf32>
      %c0_20 = arith.constant 0 : index
      %c0_21 = arith.constant 0 : index
      %32 = vector.load %arg7[%c0_20, %c0_21] : memref<16x128xf32, #tpu.memory_space<vmem>>, vector<16x128xf32>
      tpu.vector_store %arg7[%c0_20, %c0_21], %31 {strides = array<i32>} : memref<16x128xf32, #tpu.memory_space<vmem>>, vector<16x128xf32>,
    } else {
    }
    return
  }
  func.func @transform_0(%arg0: i32, %arg1: i32) -> (i32, i32) {
    %c0_i32 = arith.constant 0 : i32
    %c0_i32_0 = arith.constant 0 : i32
    return %arg0, %c0_i32 : i32, i32
  }
  func.func @transform_1(%arg0: i32, %arg1: i32) -> (i32, i32) {
    %c0_i32 = arith.constant 0 : i32
    %c0_i32_0 = arith.constant 0 : i32
    return %c0_i32, %arg1 : i32, i32
  }
  func.func @transform_2(%arg0: i32, %arg1: i32) -> (i32, i32) {
    %c0_i32 = arith.constant 0 : i32
    %c0_i32_0 = arith.constant 0 : i32
    return %c0_i32, %arg1 : i32, i32
  }
  func.func @transform_3(%arg0: i32, %arg1: i32) -> (i32, i32) {
    %c0_i32 = arith.constant 0 : i32
    %c0_i32_0 = arith.constant 0 : i32
    return %arg1, %c0_i32 : i32, i32
  }
  func.func @transform_4(%arg0: i32, %arg1: i32) -> (i32, i32) {
    %c0_i32 = arith.constant 0 : i32
    %c0_i32_0 = arith.constant 0 : i32
    %c0_i32_1 = arith.constant 0 : i32
    return %c0_i32, %c0_i32_0 : i32, i32
  }
  func.func @transform_5(%arg0: i32, %arg1: i32) -> (i32, i32) {
    %c0_i32 = arith.constant 0 : i32
    %c0_i32_0 = arith.constant 0 : i32
    return %arg0, %c0_i32 : i32, i32
  }
}

</mosaic_0001>

<llo_original>
// kernel: mm_feed_forward.1
$region0: #{mm_feed_forward.1}
  #allocation0 [shape = 'u32[]', space=smem, size = 0x4, offset = 0x4, fixed_abs, tag = 'smem constant byte address 0x4 - core index']
  #allocation1 [shape = 'u32[72,128]{1,0:T(1,128)}', space=vmem, size = 0x9000, scoped, tag = 'internal scratch']
  #allocation2 [shape = 'f32[16,128]{1,0:T(8,128)}', space=vmem, size = 0x2000, scoped, tag = 'scratch operand']
  %s0 = inlined_call_operand.vmem [shape: bf16[32,128], index: 0, kind: input, shape index: {}]
  %s1 = inlined_call_operand.vmem [shape: bf16[128,512], index: 1, kind: input, shape index: {}]
  %s2 = inlined_call_operand.vmem [shape: f32[1,512], index: 2, kind: input, shape index: {}]
  %s3 = inlined_call_operand.vmem [shape: bf16[512,128], index: 3, kind: input, shape index: {}]
  %s4 = inlined_call_operand.vmem [shape: f32[1,128], index: 4, kind: input, shape index: {}]
  %s5 = inlined_call_operand.hbm [shape: f32[32,128], index: 5, kind: output, shape index: {}]
  %s6 = sld [smem:[#allocation0]]
  $region99: #{mm_feed_forward.1} parent=0
    _
  %s8 = ssub.s32 1, %s6
  %s9 = scalar_select 0, %s8, %s6
  $region1: #{mm_feed_forward.1} parent=0
    #allocation3 [shape = 'u8[131072]{0}', space=vmem, size = 0x20000, scoped, tag = 'input window, operand 1']
    #allocation4 [shape = 'u8[16384]{0}', space=vmem, size = 0x4000, scoped, tag = 'output window, operand 0']
    #allocation5 [shape = 's32[2]{0}', space=sflag, size = 0x8, scoped, tag = 'scoped memory for mm_feed_forward.1']
    %10 = vsyncpa [#allocation5], 0
    %s11 = scalar_lea.sflag [#allocation5], 1
    %12 = vsyncpa %s11, 0
    loop: start=0, step=1, limit=6
    $region2: #{mm_feed_forward.1} parent=1 // loop_pre_header
      _
    $region3: #{mm_feed_forward.1} parent=1 // loop_header
      %s14 = sphi 0, %s18
      %p15 = scmp.ge.s32.totalorder %s14, 6
      %s21 = sphi 0, %s33
      %s22 = sphi 0, %s29
      %s23 = sphi 0, %s21
      %s24 = sphi 0, %s22
      %s25 = sphi 0, %s23
      %s26 = sphi 0, %s24
      %s36 = sphi 0, %s38
      %s39 = sphi 0, %s36
      %s40 = sphi 0, %s39
      %s56 = sphi 0, %s40
      %s62 = sphi 0, %s64
      %s65 = sphi 0, %s62
      %s66 = sphi 0, %s65
      %s82 = sphi 0, %s66
      %s88 = sphi 0, %s90
      %s91 = sphi 0, %s88
      %s92 = sphi 0, %s91
      %s108 = sphi 0, %s92
      %s114 = sphi 0, %s116
      %s117 = sphi 0, %s114
      %s118 = sphi 0, %s117
      %s134 = sphi 0, %s118
      %s138 = sphi 0, %s138
      %s140 = sphi 0, %s138
      %s141 = sphi 0, %s140
      %s155 = sphi 0, %s141
      %s161 = sphi 0, %s163
      %s164 = sphi 0, %s161
      %s165 = sphi 0, %s164
      %s181 = sphi 0, %s165
    $region4: #{mm_feed_forward.1} parent=1 // loop_header_branch
      %17 = sbr.rel (%p15) target = $region8
    $region5: #{mm_feed_forward.1} parent=1 // loop_body
      %s19 = ssub.s32 %s14, 1
      %s20 = ssub.s32 %s14, 2
      %s27 = sadd.s32 1, %s22
      %p28 = scmp.ge.s32.totalorder %s27, 2
      %s29 = scalar_select %p28, 0, %s27
      %s30 = sadd.s32 1, %s21
      %s31 = scalar_select %p28, %s30, %s21
      %p32 = scmp.ge.s32.totalorder %s31, 2
      %s33 = scalar_select %p32, 0, %s31
      %s34 = ssub.s32 %s21, %s33
      %p35 = scmp.eq.s32.totalorder %s34, 0
      %s37 = sadd.s32 %s36, 1
      %s38 = scalar_select %p35, %s36, %s37
      %p41 = pneg %p35
      %p42 = scmp.eq.s32.totalorder %s14, 3
      %p43 = por %p41, %p42
      %p44 = scmp.ne.s32.totalorder %s36, %s39
      %p45 = scmp.eq.s32.totalorder %s14, 0
      %p46 = por %p44, %p45
      %p47 = scmp.ne.s32.totalorder %s36, %s39
      %p48 = scmp.eq.s32.totalorder %s19, 3
      %p49 = por %p47, %p48
      %p50 = scmp.ne.s32.totalorder %s39, %s40
      %p51 = scmp.eq.s32.totalorder %s19, 0
      %p52 = por %p50, %p51
      %p53 = scmp.ne.s32.totalorder %s39, %s40
      %p54 = scmp.eq.s32.totalorder %s20, 3
      %p55 = por %p53, %p54
      %p57 = scmp.ne.s32.totalorder %s40, %s56
      %p58 = scmp.eq.s32.totalorder %s20, 0
      %p59 = por %p57, %p58
      %s60 = ssub.s32 %s22, %s29
      %p61 = scmp.eq.s32.totalorder %s60, 0
      %s63 = sadd.s32 %s62, 1
      %s64 = scalar_select %p61, %s62, %s63
      %p67 = pneg %p61
      %p68 = scmp.eq.s32.totalorder %s14, 3
      %p69 = por %p67, %p68
      %p70 = scmp.ne.s32.totalorder %s62, %s65
      %p71 = scmp.eq.s32.totalorder %s14, 0
      %p72 = por %p70, %p71
      %p73 = scmp.ne.s32.totalorder %s62, %s65
      %p74 = scmp.eq.s32.totalorder %s19, 3
      %p75 = por %p73, %p74
      %p76 = scmp.ne.s32.totalorder %s65, %s66
      %p77 = scmp.eq.s32.totalorder %s19, 0
      %p78 = por %p76, %p77
      %p79 = scmp.ne.s32.totalorder %s65, %s66
      %p80 = scmp.eq.s32.totalorder %s20, 3
      %p81 = por %p79, %p80
      %p83 = scmp.ne.s32.totalorder %s66, %s82
      %p84 = scmp.eq.s32.totalorder %s20, 0
      %p85 = por %p83, %p84
      %s86 = ssub.s32 %s22, %s29
      %p87 = scmp.eq.s32.totalorder %s86, 0
      %s89 = sadd.s32 %s88, 1
      %s90 = scalar_select %p87, %s88, %s89
      %p93 = pneg %p87
      %p94 = scmp.eq.s32.totalorder %s14, 3
      %p95 = por %p93, %p94
      %p96 = scmp.ne.s32.totalorder %s88, %s91
      %p97 = scmp.eq.s32.totalorder %s14, 0
      %p98 = por %p96, %p97
      %p99 = scmp.ne.s32.totalorder %s88, %s91
      %p100 = scmp.eq.s32.totalorder %s19, 3
      %p101 = por %p99, %p100
      %p102 = scmp.ne.s32.totalorder %s91, %s92
      %p103 = scmp.eq.s32.totalorder %s19, 0
      %p104 = por %p102, %p103
      %p105 = scmp.ne.s32.totalorder %s91, %s92
      %p106 = scmp.eq.s32.totalorder %s20, 3
      %p107 = por %p105, %p106
      %p109 = scmp.ne.s32.totalorder %s92, %s108
      %p110 = scmp.eq.s32.totalorder %s20, 0
      %p111 = por %p109, %p110
      %s112 = ssub.s32 %s22, %s29
      %p113 = scmp.eq.s32.totalorder %s112, 0
      %s115 = sadd.s32 %s114, 1
      %s116 = scalar_select %p113, %s114, %s115
      %p119 = pneg %p113
      %p120 = scmp.eq.s32.totalorder %s14, 3
      %p121 = por %p119, %p120
      %p122 = scmp.ne.s32.totalorder %s114, %s117
      %p123 = scmp.eq.s32.totalorder %s14, 0
      %p124 = por %p122, %p123
      %p125 = scmp.ne.s32.totalorder %s114, %s117
      %p126 = scmp.eq.s32.totalorder %s19, 3
      %p127 = por %p125, %p126
      %p128 = scmp.ne.s32.totalorder %s117, %s118
      %p129 = scmp.eq.s32.totalorder %s19, 0
      %p130 = por %p128, %p129
      %p131 = scmp.ne.s32.totalorder %s117, %s118
      %p132 = scmp.eq.s32.totalorder %s20, 3
      %p133 = por %p131, %p132
      %p135 = scmp.ne.s32.totalorder %s118, %s134
      %p136 = scmp.eq.s32.totalorder %s20, 0
      %p137 = por %p135, %p136
      %s139 = sadd.s32 %s138, 1
      %p142 = scmp.eq.s32.totalorder %s14, 3
      %p143 = scmp.ne.s32.totalorder %s138, %s140
      %p144 = scmp.eq.s32.totalorder %s14, 0
      %p145 = por %p143, %p144
      %p146 = scmp.ne.s32.totalorder %s138, %s140
      %p147 = scmp.eq.s32.totalorder %s19, 3
      %p148 = por %p146, %p147
      %p149 = scmp.ne.s32.totalorder %s140, %s141
      %p150 = scmp.eq.s32.totalorder %s19, 0
      %p151 = por %p149, %p150
      %p152 = scmp.ne.s32.totalorder %s140, %s141
      %p153 = scmp.eq.s32.totalorder %s20, 3
      %p154 = por %p152, %p153
      %p156 = scmp.ne.s32.totalorder %s141, %s155
      %p157 = scmp.eq.s32.totalorder %s20, 0
      %p158 = por %p156, %p157
      %s159 = ssub.s32 %s21, %s33
      %p160 = scmp.eq.s32.totalorder %s159, 0
      %s162 = sadd.s32 %s161, 1
      %s163 = scalar_select %p160, %s161, %s162
      %p166 = pneg %p160
      %p167 = scmp.eq.s32.totalorder %s14, 3
      %p168 = por %p166, %p167
      %p169 = scmp.ne.s32.totalorder %s161, %s164
      %p170 = scmp.eq.s32.totalorder %s14, 0
      %p171 = por %p169, %p170
      %p172 = scmp.ne.s32.totalorder %s161, %s164
      %p173 = scmp.eq.s32.totalorder %s19, 3
      %p174 = por %p172, %p173
      %p175 = scmp.ne.s32.totalorder %s164, %s165
      %p176 = scmp.eq.s32.totalorder %s19, 0
      %p177 = por %p175, %p176
      %p178 = scmp.ne.s32.totalorder %s164, %s165
      %p179 = scmp.eq.s32.totalorder %s20, 3
      %p180 = por %p178, %p179
      %p182 = scmp.ne.s32.totalorder %s165, %s181
      %p183 = scmp.eq.s32.totalorder %s20, 0
      %p184 = por %p182, %p183
      %p185 = scmp.le.s32.totalorder 1, %s14
      %p186 = scmp.lt.s32.totalorder %s14, 5
      %p187 = pnand %p185, %p186
      %p188 = pneg %p187
      // Predicated region
      $region9: #{mm_feed_forward.1} parent=5 // pred_check
        _
      $region10: #{mm_feed_forward.1} parent=5 // pred_check_branch
        %190 = sbr.rel (%p187) target = $region12
      $region11: #{mm_feed_forward.1} parent=5 // pred_region
        %s191 = ssub.s32 %s14, 1
        // Predicated region
        $region13: #{mm_feed_forward.1} parent=11 // pred_check
          %p192 = pneg %p151
        $region14: #{mm_feed_forward.1} parent=11 // pred_check_branch
          %194 = sbr.rel (%p192) target = $region16
        $region15: #{mm_feed_forward.1} parent=11 // pred_region
          _
        $region16: #{mm_feed_forward.1} parent=11 // pred_fallthru
          _
      $region12: #{mm_feed_forward.1} parent=5 // pred_fallthru
        _
      %p195 = scmp.lt.s32.totalorder %s14, 4
      // Predicated region
      $region17: #{mm_feed_forward.1} parent=5 // pred_check
        %p196 = pneg %p195
      $region18: #{mm_feed_forward.1} parent=5 // pred_check_branch
        %198 = sbr.rel (%p196) target = $region20
      $region19: #{mm_feed_forward.1} parent=5 // pred_region
        // Predicated region
        $region21: #{mm_feed_forward.1} parent=19 // pred_check
          %p199 = pneg %p46
        $region22: #{mm_feed_forward.1} parent=19 // pred_check_branch
          %201 = sbr.rel (%p199) target = $region24
        $region23: #{mm_feed_forward.1} parent=19 // pred_region
          %s202 = smul.u32 2, %s21
          %p203 = scmp.lt.s32.totalorder %s202, 3
          %s204 = scalar_select %p203, %s202, 3
          %s205 = smul.addr %s204, 4
          %s206 = scalar_lea.vmem %s0, %s205
          %s207 = smul.u32 2, %s21
        $region24: #{mm_feed_forward.1} parent=19 // pred_fallthru
          _
        // Predicated region
        $region25: #{mm_feed_forward.1} parent=19 // pred_check
          %p208 = pneg %p72
        $region26: #{mm_feed_forward.1} parent=19 // pred_check_branch
          %210 = sbr.rel (%p208) target = $region28
        $region27: #{mm_feed_forward.1} parent=19 // pred_region
          %s211 = sand.u32 %s62, 1
          %s212 = sand.u32 %s62, 1
          %s213 = smul.addr %s212, 128
          %s214 = scalar_lea.vmem [#allocation3], %s213
          %s215 = smul.u32 2, %s22
          %s216 = smul.addr %s215, 4
          %s217 = scalar_lea.vmem %s1, %s216
          // Predicated region
          $region29: #{mm_feed_forward.1} parent=27 // pred_check
            _
          $region30: #{mm_feed_forward.1} parent=27 // pred_check_branch
            %219 = sbr.rel (0) target = $region32
          $region31: #{mm_feed_forward.1} parent=27 // pred_region
            // Predicated region
            $region33: #{mm_feed_forward.1} parent=31 // pred_check
              _
            $region34: #{mm_feed_forward.1} parent=31 // pred_check_branch
              %221 = sbr.rel (0) target = $region36
            $region35: #{mm_feed_forward.1} parent=31 // pred_region
              // Predicated region
              $region48: #{mm_feed_forward.1} parent=35 // pred_check
                _
              $region49: #{mm_feed_forward.1} parent=35 // pred_check_branch
                %267 = sbr.rel (0) target = $region51
              $region50: #{mm_feed_forward.1} parent=35 // pred_region
                loop: start=0, step=1, limit=1
                $region52: #{mm_feed_forward.1} parent=50 // loop_pre_header
                  _
                $region53: #{mm_feed_forward.1} parent=50 // loop_header
                  %s269 = sphi 0, %s273
                  %p270 = scmp.ge.s32.totalorder %s269, 1
                  %s274 = sphi %s217, %s217
                  %s275 = sphi %s214, %s214
                $region54: #{mm_feed_forward.1} parent=50 // loop_header_branch
                  %272 = sbr.rel (%p270) target = $region58
                $region55: #{mm_feed_forward.1} parent=50 // loop_body
                  %v276 = vld [vmem:[%s274] sm:$0xff]
                  %277 = vst [vmem:[%s275] sm:$0xff] %v276
                  %v278 = vld [vmem:[%s274 + $0x10] sm:$0xff]
                  %279 = vst [vmem:[%s275 + $0x8] sm:$0xff] %v278
                  %v280 = vld [vmem:[%s274 + $0x20] sm:$0xff]
                  %281 = vst [vmem:[%s275 + $0x10] sm:$0xff] %v280
                  %v282 = vld [vmem:[%s274 + $0x30] sm:$0xff]
                  %283 = vst [vmem:[%s275 + $0x18] sm:$0xff] %v282
                  %v284 = vld [vmem:[%s274 + $0x40] sm:$0xff]
                  %285 = vst [vmem:[%s275 + $0x20] sm:$0xff] %v284
                  %v286 = vld [vmem:[%s274 + $0x50] sm:$0xff]
                  %287 = vst [vmem:[%s275 + $0x28] sm:$0xff] %v286
                  %v288 = vld [vmem:[%s274 + $0x60] sm:$0xff]
                  %289 = vst [vmem:[%s275 + $0x30] sm:$0xff] %v288
                  %v290 = vld [vmem:[%s274 + $0x70] sm:$0xff]
                  %291 = vst [vmem:[%s275 + $0x38] sm:$0xff] %v290
                  %v292 = vld [vmem:[%s274 + $0x80] sm:$0xff]
                  %293 = vst [vmem:[%s275 + $0x40] sm:$0xff] %v292
                  %v294 = vld [vmem:[%s274 + $0x90] sm:$0xff]
                  %295 = vst [vmem:[%s275 + $0x48] sm:$0xff] %v294
                  %v296 = vld [vmem:[%s274 + $0xa0] sm:$0xff]
                  %297 = vst [vmem:[%s275 + $0x50] sm:$0xff] %v296
                  %v298 = vld [vmem:[%s274 + $0xb0] sm:$0xff]
                  %299 = vst [vmem:[%s275 + $0x58] sm:$0xff] %v298
                  %v300 = vld [vmem:[%s274 + $0xc0] sm:$0xff]
                  %301 = vst [vmem:[%s275 + $0x60] sm:$0xff] %v300
                  %v302 = vld [vmem:[%s274 + $0xd0] sm:$0xff]
                  %303 = vst [vmem:[%s275 + $0x68] sm:$0xff] %v302
                  %v304 = vld [vmem:[%s274 + $0xe0] sm:$0xff]
                  %305 = vst [vmem:[%s275 + $0x70] sm:$0xff] %v304
                  %v306 = vld [vmem:[%s274 + $0xf0] sm:$0xff]
                  %307 = vst [vmem:[%s275 + $0x78] sm:$0xff] %v306
                $region56: #{mm_feed_forward.1} parent=50 // loop_footer
                  %s273 = sadd.s32 1, %s269
                $region57: #{mm_feed_forward.1} parent=50 // loop_footer_branch
                  %268 = sbr.rel target = $region53
                $region58: #{mm_feed_forward.1} parent=50 // loop_exit
                  _
              $region51: #{mm_feed_forward.1} parent=35 // pred_fallthru
                _
              // Predicated region
              $region59: #{mm_feed_forward.1} parent=35 // pred_check
                _
              $region60: #{mm_feed_forward.1} parent=35 // pred_check_branch
                %309 = sbr.rel target = $region62
              $region61: #{mm_feed_forward.1} parent=35 // pred_region
                _
              $region62: #{mm_feed_forward.1} parent=35 // pred_fallthru
                _
            $region36: #{mm_feed_forward.1} parent=31 // pred_fallthru
              _
            // Predicated region
            $region37: #{mm_feed_forward.1} parent=31 // pred_check
              _
            $region38: #{mm_feed_forward.1} parent=31 // pred_check_branch
              %223 = sbr.rel target = $region40
            $region39: #{mm_feed_forward.1} parent=31 // pred_region
              %s225 = ssub.s32 256, 1
              loop: start=0, step=1, limit=1
              $region41: #{mm_feed_forward.1} parent=39 // loop_pre_header
                _
              $region42: #{mm_feed_forward.1} parent=39 // loop_header
                %s227 = sphi 0, %s231
                %p228 = scmp.ge.s32.totalorder %s227, 1
                %s232 = sphi %s217, %s217
                %s233 = sphi %s214, %s214
              $region43: #{mm_feed_forward.1} parent=39 // loop_header_branch
                %230 = sbr.rel (%p228) target = $region47
              $region44: #{mm_feed_forward.1} parent=39 // loop_body
                %v234 = vld [vmem:[%s232] sm:%s225]
                %235 = vst [vmem:[%s233] sm:%s225] %v234
                %v236 = vld [vmem:[%s232 + $0x10] sm:%s225]
                %237 = vst [vmem:[%s233 + $0x8] sm:%s225] %v236
                %v238 = vld [vmem:[%s232 + $0x20] sm:%s225]
                %239 = vst [vmem:[%s233 + $0x10] sm:%s225] %v238
                %v240 = vld [vmem:[%s232 + $0x30] sm:%s225]
                %241 = vst [vmem:[%s233 + $0x18] sm:%s225] %v240
                %v242 = vld [vmem:[%s232 + $0x40] sm:%s225]
                %243 = vst [vmem:[%s233 + $0x20] sm:%s225] %v242
                %v244 = vld [vmem:[%s232 + $0x50] sm:%s225]
                %245 = vst [vmem:[%s233 + $0x28] sm:%s225] %v244
                %v246 = vld [vmem:[%s232 + $0x60] sm:%s225]
                %247 = vst [vmem:[%s233 + $0x30] sm:%s225] %v246
                %v248 = vld [vmem:[%s232 + $0x70] sm:%s225]
                %249 = vst [vmem:[%s233 + $0x38] sm:%s225] %v248
                %v250 = vld [vmem:[%s232 + $0x80] sm:%s225]
                %251 = vst [vmem:[%s233 + $0x40] sm:%s225] %v250
                %v252 = vld [vmem:[%s232 + $0x90] sm:%s225]
                %253 = vst [vmem:[%s233 + $0x48] sm:%s225] %v252
                %v254 = vld [vmem:[%s232 + $0xa0] sm:%s225]
                %255 = vst [vmem:[%s233 + $0x50] sm:%s225] %v254
                %v256 = vld [vmem:[%s232 + $0xb0] sm:%s225]
                %257 = vst [vmem:[%s233 + $0x58] sm:%s225] %v256
                %v258 = vld [vmem:[%s232 + $0xc0] sm:%s225]
                %259 = vst [vmem:[%s233 + $0x60] sm:%s225] %v258
                %v260 = vld [vmem:[%s232 + $0xd0] sm:%s225]
                %261 = vst [vmem:[%s233 + $0x68] sm:%s225] %v260
                %v262 = vld [vmem:[%s232 + $0xe0] sm:%s225]
                %263 = vst [vmem:[%s233 + $0x70] sm:%s225] %v262
                %v264 = vld [vmem:[%s232 + $0xf0] sm:%s225]
                %265 = vst [vmem:[%s233 + $0x78] sm:%s225] %v264
              $region45: #{mm_feed_forward.1} parent=39 // loop_footer
                %s231 = sadd.s32 1, %s227
              $region46: #{mm_feed_forward.1} parent=39 // loop_footer_branch
                %226 = sbr.rel target = $region42
              $region47: #{mm_feed_forward.1} parent=39 // loop_exit
                _
            $region40: #{mm_feed_forward.1} parent=31 // pred_fallthru
              _
          $region32: #{mm_feed_forward.1} parent=27 // pred_fallthru
            _
          %310 = vnop
        $region28: #{mm_feed_forward.1} parent=19 // pred_fallthru
          _
        // Predicated region
        $region63: #{mm_feed_forward.1} parent=19 // pred_check
          %p311 = pneg %p98
        $region64: #{mm_feed_forward.1} parent=19 // pred_check_branch
          %313 = sbr.rel (%p311) target = $region66
        $region65: #{mm_feed_forward.1} parent=19 // pred_region
          %s314 = smul.u32 2, %s22
          %p315 = scmp.lt.s32.totalorder %s314, 3
          %s316 = scalar_select %p315, %s314, 3
          %s317 = scalar_lea.vmem %s2, %s316
          %s318 = smul.u32 2, %s22
        $region66: #{mm_feed_forward.1} parent=19 // pred_fallthru
          _
        // Predicated region
        $region67: #{mm_feed_forward.1} parent=19 // pred_check
          %p319 = pneg %p124
        $region68: #{mm_feed_forward.1} parent=19 // pred_check_branch
          %321 = sbr.rel (%p319) target = $region70
        $region69: #{mm_feed_forward.1} parent=19 // pred_region
          %s322 = smul.u32 32, %s22
          %p323 = scmp.lt.s32.totalorder %s322, 63
          %s324 = scalar_select %p323, %s322, 63
          %s325 = smul.addr %s324, 4
          %s326 = scalar_lea.vmem %s3, %s325
          %s327 = smul.u32 32, %s22
        $region70: #{mm_feed_forward.1} parent=19 // pred_fallthru
          _
      $region20: #{mm_feed_forward.1} parent=5 // pred_fallthru
        _
      %p328 = scmp.le.s32.totalorder 1, %s14
      %p329 = scmp.lt.s32.totalorder %s14, 5
      %p330 = pnand %p328, %p329
      %p331 = pneg %p330
      // Predicated region
      $region71: #{mm_feed_forward.1} parent=5 // pred_check
        _
      $region72: #{mm_feed_forward.1} parent=5 // pred_check_branch
        %333 = sbr.rel (%p330) target = $region74
      $region73: #{mm_feed_forward.1} parent=5 // pred_region
        %s334 = ssub.s32 %s14, 1
        %s335 = sand.u32 %s65, 1
        %s336 = sand.u32 %s65, 1
        %s337 = smul.addr %s336, 128
        %s338 = scalar_lea.vmem [#allocation3], %s337
        // Predicated region
        $region75: #{mm_feed_forward.1} parent=73 // pred_check
          %p339 = pneg %p78
        $region76: #{mm_feed_forward.1} parent=73 // pred_check_branch
          %341 = sbr.rel (%p339) target = $region78
        $region77: #{mm_feed_forward.1} parent=73 // pred_region
          _
        $region78: #{mm_feed_forward.1} parent=73 // pred_fallthru
          _
        %s342 = smul.u32 2, %s23
        %p343 = scmp.lt.s32.totalorder %s342, 3
        %s344 = scalar_select %p343, %s342, 3
        %s345 = smul.addr %s344, 4
        %s346 = scalar_lea.vmem %s0, %s345
        %p347 = pneg %p52
        %p348 = pneg %p49
        %s349 = sand.u32 %s65, 1
        %s350 = sand.u32 %s65, 1
        %s351 = smul.addr %s350, 128
        %s352 = scalar_lea.vmem [#allocation3], %s351
        %p353 = pneg %p78
        %p354 = pneg %p75
        %s355 = smul.u32 2, %s24
        %p356 = scmp.lt.s32.totalorder %s355, 3
        %s357 = scalar_select %p356, %s355, 3
        %s358 = scalar_lea.vmem %s2, %s357
        %p359 = pneg %p104
        %p360 = pneg %p101
        %s361 = smul.u32 32, %s24
        %p362 = scmp.lt.s32.totalorder %s361, 63
        %s363 = scalar_select %p362, %s361, 63
        %s364 = smul.addr %s363, 4
        %s365 = scalar_lea.vmem %s3, %s364
        %p366 = pneg %p130
        %p367 = pneg %p127
        %p368 = pneg %p151
        %p369 = pneg %p148
        %p370 = pneg %p177
        %p371 = pneg %p174
        %s372 = sand.u32 %s164, 1
        %s373 = scalar_lea.sflag [#allocation5], %s372
        %s374 = sand.u32 %s164, 1
        %s375 = smul.addr %s374, 16
        %s376 = scalar_lea.vmem [#allocation4], %s375
        %s377 = smul.u32 2, %s23
        %p378 = scmp.lt.s32.totalorder %s377, 3
        %s379 = scalar_select %p378, %s377, 3
        %s380 = smul.addr %s379, 4
        %s381 = scalar_lea.vmem %s0, %s380
        %s382 = smul.u32 2, %s23
        %s383 = smul.u32 2, %s24
        %s384 = smul.u32 2, %s24
        %p385 = scmp.lt.s32.totalorder %s384, 3
        %s386 = scalar_select %p385, %s384, 3
        %s387 = scalar_lea.vmem %s2, %s386
        %s388 = smul.u32 2, %s24
        %s389 = smul.u32 32, %s24
        %p390 = scmp.lt.s32.totalorder %s389, 63
        %s391 = scalar_select %p390, %s389, 63
        %s392 = smul.addr %s391, 4
        %s393 = scalar_lea.vmem %s3, %s392
        %s394 = smul.u32 32, %s24
        %s395 = smul.u32 2, %s23
        %p396 = scmp.eq.s32.totalorder %s24, 0
        // Predicated region
        $region79: #{mm_feed_forward.1} parent=73 // pred_check
          %p397 = pneg %p396
        $region80: #{mm_feed_forward.1} parent=73 // pred_check_branch
          %399 = sbr.rel (%p397) target = $region82
        $region81: #{mm_feed_forward.1} parent=73 // pred_region
          %v400 = vld [vmem:[%s4] sm:$0x1]
          %v402 = vperm.slane %v400, 0
          %404 = vst [vmem:[#allocation2] sm:$0xff] %v402
          %405 = vst [vmem:[#allocation2 + $0x8] sm:$0xff] %v402
        $region82: #{mm_feed_forward.1} parent=73 // pred_fallthru
          _
        %v406 = vld [vmem:[%s381] sm:$0xf]
        %v407 = vld [vmem:[%s381 + $0x4] sm:$0xf]
        %v408 = vld [vmem:[%s338] sm:$0xff]
        %v409 = vld [vmem:[%s338 + $0x8] sm:$0xff]
        %v410 = vld [vmem:[%s338 + $0x10] sm:$0xff]
        %v411 = vld [vmem:[%s338 + $0x18] sm:$0xff]
        %v412 = vld [vmem:[%s338 + $0x20] sm:$0xff]
        %v413 = vld [vmem:[%s338 + $0x28] sm:$0xff]
        %v414 = vld [vmem:[%s338 + $0x30] sm:$0xff]
        %v415 = vld [vmem:[%s338 + $0x38] sm:$0xff]
        %v416 = vld [vmem:[%s338 + $0x40] sm:$0xff]
        %v417 = vld [vmem:[%s338 + $0x48] sm:$0xff]
        %v418 = vld [vmem:[%s338 + $0x50] sm:$0xff]
        %v419 = vld [vmem:[%s338 + $0x58] sm:$0xff]
        %v420 = vld [vmem:[%s338 + $0x60] sm:$0xff]
        %v421 = vld [vmem:[%s338 + $0x68] sm:$0xff]
        %v422 = vld [vmem:[%s338 + $0x70] sm:$0xff]
        %v423 = vld [vmem:[%s338 + $0x78] sm:$0xff]
        %v424 = vld [vmem:[%s387] sm:$0x3]
        %v426 = vperm.slane %v424, 0
        %v427 = vperm.slane %v424, 1
        %v432 = vunpack.c.l.b16 %v406
        %v433 = vunpack.c.l.b16 %v407
        %v434 = vpack.c.b16 %v433, %v432
        %v452 = vunpack.c.l.b16 %v408
        %v453 = vunpack.c.h.b16 %v408
        %v454 = vunpack.c.l.b16 %v409
        %v455 = vunpack.c.h.b16 %v409
        %v456 = vunpack.c.l.b16 %v410
        %v457 = vunpack.c.h.b16 %v410
        %v458 = vunpack.c.l.b16 %v411
        %v459 = vunpack.c.h.b16 %v411
        %v460 = vunpack.c.l.b16 %v412
        %v461 = vunpack.c.h.b16 %v412
        %v462 = vunpack.c.l.b16 %v413
        %v463 = vunpack.c.h.b16 %v413
        %v464 = vunpack.c.l.b16 %v414
        %v465 = vunpack.c.h.b16 %v414
        %v466 = vunpack.c.l.b16 %v415
        %v467 = vunpack.c.h.b16 %v415
        %v468 = vunpack.c.l.b16 %v416
        %v469 = vunpack.c.h.b16 %v416
        %v470 = vunpack.c.l.b16 %v417
        %v471 = vunpack.c.h.b16 %v417
        %v472 = vunpack.c.l.b16 %v418
        %v473 = vunpack.c.h.b16 %v418
        %v474 = vunpack.c.l.b16 %v419
        %v475 = vunpack.c.h.b16 %v419
        %v476 = vunpack.c.l.b16 %v420
        %v477 = vunpack.c.h.b16 %v420
        %v478 = vunpack.c.l.b16 %v421
        %v479 = vunpack.c.h.b16 %v421
        %v480 = vunpack.c.l.b16 %v422
        %v481 = vunpack.c.h.b16 %v422
        %v482 = vunpack.c.l.b16 %v423
        %v483 = vunpack.c.h.b16 %v423
        %v484 = vpack.c.b16 %v454, %v452
        %v485 = vpack.c.b16 %v455, %v453
        %v486 = vpack.c.b16 %v458, %v456
        %v487 = vpack.c.b16 %v459, %v457
        %v488 = vpack.c.b16 %v462, %v460
        %v489 = vpack.c.b16 %v463, %v461
        %v490 = vpack.c.b16 %v466, %v464
        %v491 = vpack.c.b16 %v467, %v465
        %v492 = vpack.c.b16 %v470, %v468
        %v493 = vpack.c.b16 %v471, %v469
        %v494 = vpack.c.b16 %v474, %v472
        %v495 = vpack.c.b16 %v475, %v473
        %v496 = vpack.c.b16 %v478, %v476
        %v497 = vpack.c.b16 %v479, %v477
        %v498 = vpack.c.b16 %v482, %v480
        %v499 = vpack.c.b16 %v483, %v481
        %516 = vmatpush.bf16.msra.mxu0 %v498
        %517 = vmatpush.bf16.msra.mxu0 %v496
        %518 = vmatpush.bf16.msra.mxu0 %v494
        %519 = vmatpush.bf16.msra.mxu0 %v492
        %520 = vmatpush.bf16.msra.mxu0 %v490
        %521 = vmatpush.bf16.msra.mxu0 %v488
        %522 = vmatpush.bf16.msra.mxu0 %v486
        %523 = vmatpush.bf16.msra.mxu0 %v484
        %524 = vmatmul.bf16.gmra.mxu0 %v434
        %v525 = vpop.f32.mrf.mxu0
        %v526 = vadd.f32 %v426, %v525
        %v527 = vpop.f32.mrf.mxu0
        %v528 = vadd.f32 %v426, %v527
        %529 = vdwg.mxu0
        %530 = vmatpush.bf16.msra.mxu0 %v499
        %531 = vmatpush.bf16.msra.mxu0 %v497
        %532 = vmatpush.bf16.msra.mxu0 %v495
        %533 = vmatpush.bf16.msra.mxu0 %v493
        %534 = vmatpush.bf16.msra.mxu0 %v491
        %535 = vmatpush.bf16.msra.mxu0 %v489
        %536 = vmatpush.bf16.msra.mxu0 %v487
        %537 = vmatpush.bf16.msra.mxu0 %v485
        %538 = vmatmul.bf16.gmra.mxu0 %v434
        %v539 = vpop.f32.mrf.mxu0
        %v540 = vadd.f32 %v427, %v539
        %v541 = vpop.f32.mrf.mxu0
        %v542 = vadd.f32 %v427, %v541
        %543 = vdwg.mxu0
        %v544 = vmul.f32 %v526, 0.5
        %v545 = vmul.f32 %v540, 0.5
        %v546 = vmul.f32 %v528, 0.5
        %v547 = vmul.f32 %v542, 0.5
        %v548 = vmul.f32 %v526, 0.044715
        %v549 = vmul.f32 %v540, 0.044715
        %v550 = vmul.f32 %v528, 0.044715
        %v551 = vmul.f32 %v542, 0.044715
        %v552 = vmul.f32 %v548, %v526
        %v553 = vmul.f32 %v549, %v540
        %v554 = vmul.f32 %v550, %v528
        %v555 = vmul.f32 %v551, %v542
        %v556 = vmul.f32 %v552, %v526
        %v557 = vmul.f32 %v553, %v540
        %v558 = vmul.f32 %v554, %v528
        %v559 = vmul.f32 %v555, %v542
        %v560 = vadd.f32 %v526, %v556
        %v561 = vadd.f32 %v540, %v557
        %v562 = vadd.f32 %v528, %v558
        %v563 = vadd.f32 %v542, %v559
        %v564 = vmul.f32 %v560, 0.7978846
        %v565 = vmul.f32 %v561, 0.7978846
        %v566 = vmul.f32 %v562, 0.7978846
        %v567 = vmul.f32 %v563, 0.7978846
        %v568 = vtanh.pop %v564
        %v569 = vtanh.pop %v565
        %v570 = vtanh.pop %v566
        %v571 = vtanh.pop %v567
        %v572 = vadd.f32 %v568, 1.0
        %v573 = vadd.f32 %v569, 1.0
        %v574 = vadd.f32 %v570, 1.0
        %v575 = vadd.f32 %v571, 1.0
        %v576 = vmul.f32 %v544, %v572
        %v577 = vmul.f32 %v545, %v573
        %v578 = vmul.f32 %v546, %v574
        %v579 = vmul.f32 %v547, %v575
        %v580 = vld [vmem:[#allocation2] sm:$0xff]
        %v581 = vld [vmem:[#allocation2 + $0x8] sm:$0xff]
        %v582 = vpack.c.bf16 %v578, %v576
        %v583 = vpack.c.bf16 %v579, %v577
        %v584 = vld [vmem:[%s393] sm:$0xf]
        %v585 = vld [vmem:[%s393 + $0x4] sm:$0xf]
        %v586 = vld [vmem:[%s393 + $0x8] sm:$0xf]
        %v587 = vld [vmem:[%s393 + $0xc] sm:$0xf]
        %v588 = vld [vmem:[%s393 + $0x10] sm:$0xf]
        %v589 = vld [vmem:[%s393 + $0x14] sm:$0xf]
        %v590 = vld [vmem:[%s393 + $0x18] sm:$0xf]
        %v591 = vld [vmem:[%s393 + $0x1c] sm:$0xf]
        %v592 = vld [vmem:[%s393 + $0x20] sm:$0xf]
        %v593 = vld [vmem:[%s393 + $0x24] sm:$0xf]
        %v594 = vld [vmem:[%s393 + $0x28] sm:$0xf]
        %v595 = vld [vmem:[%s393 + $0x2c] sm:$0xf]
        %v596 = vld [vmem:[%s393 + $0x30] sm:$0xf]
        %v597 = vld [vmem:[%s393 + $0x34] sm:$0xf]
        %v598 = vld [vmem:[%s393 + $0x38] sm:$0xf]
        %v599 = vld [vmem:[%s393 + $0x3c] sm:$0xf]
        %v600 = vld [vmem:[%s393 + $0x40] sm:$0xf]
        %v601 = vld [vmem:[%s393 + $0x44] sm:$0xf]
        %v602 = vld [vmem:[%s393 + $0x48] sm:$0xf]
        %v603 = vld [vmem:[%s393 + $0x4c] sm:$0xf]
        %v604 = vld [vmem:[%s393 + $0x50] sm:$0xf]
        %v605 = vld [vmem:[%s393 + $0x54] sm:$0xf]
        %v606 = vld [vmem:[%s393 + $0x58] sm:$0xf]
        %v607 = vld [vmem:[%s393 + $0x5c] sm:$0xf]
        %v608 = vld [vmem:[%s393 + $0x60] sm:$0xf]
        %v609 = vld [vmem:[%s393 + $0x64] sm:$0xf]
        %v610 = vld [vmem:[%s393 + $0x68] sm:$0xf]
        %v611 = vld [vmem:[%s393 + $0x6c] sm:$0xf]
        %v612 = vld [vmem:[%s393 + $0x70] sm:$0xf]
        %v613 = vld [vmem:[%s393 + $0x74] sm:$0xf]
        %v614 = vld [vmem:[%s393 + $0x78] sm:$0xf]
        %v615 = vld [vmem:[%s393 + $0x7c] sm:$0xf]
        %v648 = vunpack.c.l.b16 %v584
        %v649 = vunpack.c.l.b16 %v585
        %v650 = vunpack.c.l.b16 %v586
        %v651 = vunpack.c.l.b16 %v587
        %v652 = vunpack.c.l.b16 %v588
        %v653 = vunpack.c.l.b16 %v589
        %v654 = vunpack.c.l.b16 %v590
        %v655 = vunpack.c.l.b16 %v591
        %v656 = vunpack.c.l.b16 %v592
        %v657 = vunpack.c.l.b16 %v593
        %v658 = vunpack.c.l.b16 %v594
        %v659 = vunpack.c.l.b16 %v595
        %v660 = vunpack.c.l.b16 %v596
        %v661 = vunpack.c.l.b16 %v597
        %v662 = vunpack.c.l.b16 %v598
        %v663 = vunpack.c.l.b16 %v599
        %v664 = vunpack.c.l.b16 %v600
        %v665 = vunpack.c.l.b16 %v601
        %v666 = vunpack.c.l.b16 %v602
        %v667 = vunpack.c.l.b16 %v603
        %v668 = vunpack.c.l.b16 %v604
        %v669 = vunpack.c.l.b16 %v605
        %v670 = vunpack.c.l.b16 %v606
        %v671 = vunpack.c.l.b16 %v607
        %v672 = vunpack.c.l.b16 %v608
        %v673 = vunpack.c.l.b16 %v609
        %v674 = vunpack.c.l.b16 %v610
        %v675 = vunpack.c.l.b16 %v611
        %v676 = vunpack.c.l.b16 %v612
        %v677 = vunpack.c.l.b16 %v613
        %v678 = vunpack.c.l.b16 %v614
        %v679 = vunpack.c.l.b16 %v615
        %v680 = vpack.c.b16 %v649, %v648
        %v681 = vpack.c.b16 %v651, %v650
        %v682 = vpack.c.b16 %v653, %v652
        %v683 = vpack.c.b16 %v655, %v654
        %v684 = vpack.c.b16 %v657, %v656
        %v685 = vpack.c.b16 %v659, %v658
        %v686 = vpack.c.b16 %v661, %v660
        %v687 = vpack.c.b16 %v663, %v662
        %v688 = vpack.c.b16 %v665, %v664
        %v689 = vpack.c.b16 %v667, %v666
        %v690 = vpack.c.b16 %v669, %v668
        %v691 = vpack.c.b16 %v671, %v670
        %v692 = vpack.c.b16 %v673, %v672
        %v693 = vpack.c.b16 %v675, %v674
        %v694 = vpack.c.b16 %v677, %v676
        %v695 = vpack.c.b16 %v679, %v678
        %712 = vmatpush.bf16.msra.mxu0 %v687
        %713 = vmatpush.bf16.msra.mxu0 %v686
        %714 = vmatpush.bf16.msra.mxu0 %v685
        %715 = vmatpush.bf16.msra.mxu0 %v684
        %716 = vmatpush.bf16.msra.mxu0 %v683
        %717 = vmatpush.bf16.msra.mxu0 %v682
        %718 = vmatpush.bf16.msra.mxu0 %v681
        %719 = vmatpush.bf16.msra.mxu0 %v680
        %720 = vmatmul.bf16.gmra.mxu0 %v582
        %v721 = vpop.f32.mrf.mxu0
        %v722 = vadd.f32 0.0, %v721
        %v723 = vpop.f32.mrf.mxu0
        %v724 = vadd.f32 0.0, %v723
        %725 = vdwg.mxu0
        %726 = vmatpush.bf16.msra.mxu0 %v695
        %727 = vmatpush.bf16.msra.mxu0 %v694
        %728 = vmatpush.bf16.msra.mxu0 %v693
        %729 = vmatpush.bf16.msra.mxu0 %v692
        %730 = vmatpush.bf16.msra.mxu0 %v691
        %731 = vmatpush.bf16.msra.mxu0 %v690
        %732 = vmatpush.bf16.msra.mxu0 %v689
        %733 = vmatpush.bf16.msra.mxu0 %v688
        %734 = vmatmul.bf16.gmra.mxu0 %v583
        %v735 = vpop.f32.mrf.mxu0
        %v736 = vadd.f32 %v722, %v735
        %v737 = vpop.f32.mrf.mxu0
        %v738 = vadd.f32 %v724, %v737
        %739 = vdwg.mxu0
        %v740 = vadd.f32 %v580, %v736
        %v741 = vadd.f32 %v581, %v738
        %742 = vst [vmem:[#allocation2] sm:$0xff] %v740
        %743 = vst [vmem:[#allocation2 + $0x8] sm:$0xff] %v741
        %p744 = scmp.eq.s32.totalorder %s24, 1
        // Predicated region
        $region83: #{mm_feed_forward.1} parent=73 // pred_check
          %p745 = pneg %p744
        $region84: #{mm_feed_forward.1} parent=73 // pred_check_branch
          %747 = sbr.rel (%p745) target = $region86
        $region85: #{mm_feed_forward.1} parent=73 // pred_region
          %v748 = vld [vmem:[#allocation2] sm:$0xff]
          %v749 = vld [vmem:[#allocation2 + $0x8] sm:$0xff]
          %750 = vst [vmem:[%s376] sm:$0xff] %v748
          %751 = vst [vmem:[%s376 + $0x8] sm:$0xff] %v749
        $region86: #{mm_feed_forward.1} parent=73 // pred_fallthru
          _
        %s752 = sand.u32 %s164, 1
        %s753 = scalar_lea.sflag [#allocation5], %s752
        %s754 = sand.u32 %s164, 1
        %s755 = smul.addr %s754, 16
        %s756 = scalar_lea.vmem [#allocation4], %s755
        // Predicated region
        $region87: #{mm_feed_forward.1} parent=73 // pred_check
          %p757 = pneg %p174
        $region88: #{mm_feed_forward.1} parent=73 // pred_check_branch
          %759 = sbr.rel (%p757) target = $region90
        $region89: #{mm_feed_forward.1} parent=73 // pred_region
          %s760 = smul.u32 2, %s23
          %762 = vsyncadd %s753, 0
          %s763 = smul.addr %s760, 8
          %s764 = scalar_lea.hbm %s5, %s763
          %s765 = sshll.u32 %s756, 4
          %s766 = int_to_ptr.vmem [resolvable:$true] %s765
          %s767 = sshll.u32 %s764, 4
          %s768 = int_to_ptr.hbm [resolvable:$true] %s767
          %773 = dma.vmem_to_hbm [thread:$0]  %s766, 256, %s768, %s753, 128, 128, 8
        $region90: #{mm_feed_forward.1} parent=73 // pred_fallthru
          _
      $region74: #{mm_feed_forward.1} parent=5 // pred_fallthru
        _
      %p774 = scmp.le.s32.totalorder 2, %s14
      // Predicated region
      $region91: #{mm_feed_forward.1} parent=5 // pred_check
        %p775 = pneg %p774
      $region92: #{mm_feed_forward.1} parent=5 // pred_check_branch
        %777 = sbr.rel (%p775) target = $region94
      $region93: #{mm_feed_forward.1} parent=5 // pred_region
        %s778 = ssub.s32 %s14, 2
        // Predicated region
        $region95: #{mm_feed_forward.1} parent=93 // pred_check
          %p779 = pneg %p180
        $region96: #{mm_feed_forward.1} parent=93 // pred_check_branch
          %781 = sbr.rel (%p779) target = $region98
        $region97: #{mm_feed_forward.1} parent=93 // pred_region
          %s782 = sand.u32 %s165, 1
          %s783 = scalar_lea.sflag [#allocation5], %s782
          %s784 = sand.u32 %s165, 1
          %s785 = smul.addr %s784, 16
          %s786 = scalar_lea.vmem [#allocation4], %s785
          %788 = dma.done %s783, 256
        $region98: #{mm_feed_forward.1} parent=93 // pred_fallthru
          _
      $region94: #{mm_feed_forward.1} parent=5 // pred_fallthru
        _
    $region6: #{mm_feed_forward.1} parent=1 // loop_footer
      %s18 = sadd.s32 1, %s14
    $region7: #{mm_feed_forward.1} parent=1 // loop_footer_branch
      %13 = sbr.rel target = $region3
    $region8: #{mm_feed_forward.1} parent=1 // loop_exit
      _
    %789 = vsyncpa [#allocation5], 1
    %s790 = scalar_lea.sflag [#allocation5], 1
    %791 = vsyncpa %s790, 1

</llo_original>
